<compile_context>
chip_gen: v6e
topology: v6e:2x2x1
jax: 0.10.0
libtpu: 0.0.40
codegen_flags: <defaults>
</compile_context>

<pallas_src>
import functools

import jax
import jax.numpy as jnp
from jax.experimental import pallas as pl
from jax.experimental.pallas import tpu as pltpu


def _round_up(x, m):
    return ((x + m - 1) // m) * m


def _plan_dim(size, align, max_tile):
    """Pick (tile, padded_size) for one dimension.

    * size <= max_tile  -> one full-extent block (exempt from the (8,128)
      divisibility rule), no padding, no post-kernel slice.
    * otherwise         -> tile is a multiple of `align`, chosen (with a small
      floor so tiles don't degenerate) to minimize padding waste; the dim is
      padded up to a multiple of the chosen tile.
    """
    if size <= max_tile:
        return size, size
    lo = max(align, min(64, max_tile))
    best_tile = max_tile
    best_pad = _round_up(size, max_tile)
    t = max_tile - align
    while t >= lo:
        pad = _round_up(size, t)
        if pad < best_pad:
            best_tile, best_pad = t, pad
        if best_pad == size:
            break
        t -= align
    return best_tile, best_pad


def _linear_sigmoid_kernel(x_ref, w_ref, b_ref, o_ref, acc_ref):
    # x_ref: (TB, TK) bf16   w_ref: (TK, TN) bf16   b_ref: (1, TN) f32
    # o_ref: (TB, TN)        acc_ref: (TB, TN) f32 scratch (K-reduction acc)
    k = pl.program_id(2)

    @pl.when(k == 0)
    def _():
        acc_ref[...] = jnp.zeros_like(acc_ref)

    acc_ref[...] += jnp.dot(
        x_ref[...], w_ref[...], preferred_element_type=jnp.float32
    )

    @pl.when(k == pl.num_programs(2) - 1)
    def _():
        z = acc_ref[...] + b_ref[...]  # f32 bias broadcast over the batch tile
        # sigmoid(z) = 1 / (1 + exp(-z)); exp and the approx reciprocal both
        # run on the EUP slot instead of the VALU.
        o_ref[...] = pl.reciprocal(1.0 + jnp.exp(-z), approx=True).astype(o_ref.dtype)


@functools.partial(jax.jit, static_argnames=("block_b", "block_n", "block_k"))
def net_forward(x, w, b, *, block_b=512, block_n=512, block_k=512):
    """y = sigmoid(x @ w + b) as a fused, tiled Pallas TPU kernel.

    x: (B, n_inp)        w: (n_inp, n_out)  (transpose of PyTorch fc1.weight)
    b: (n_out,)
    """
    B, K = x.shape
    N = w.shape[1]
    out_dtype = x.dtype

    # Tiling plan: batch is a sublane dim (align 8); K and N are lane dims
    # (align 128).  Dims fitting in a single block stay unpadded/full-extent.
    TB, B_pad = _plan_dim(B, 8, block_b)
    TK, K_pad = _plan_dim(K, 128, block_k)
    TN, N_pad = _plan_dim(N, 128, block_n)

    # bf16 MXU inputs (cast fuses into the pad when padding is needed);
    # accumulation stays f32 inside the kernel.
    x_in = x.astype(jnp.bfloat16)
    if (B_pad, K_pad) != (B, K):
        x_in = jnp.pad(x_in, ((0, B_pad - B), (0, K_pad - K)))
    w_in = w.astype(jnp.bfloat16)
    if (K_pad, N_pad) != (K, N):
        w_in = jnp.pad(w_in, ((0, K_pad - K), (0, N_pad - N)))
    b_in = b.astype(jnp.float32).reshape(1, N)
    if N_pad != N:
        b_in = jnp.pad(b_in, ((0, 0), (0, N_pad - N)))

    grid = (B_pad // TB, N_pad // TN, K_pad // TK)

    out_itemsize = jnp.dtype(out_dtype).itemsize
    block_bytes = (
        2 * (TB * TK + TK * TN)       # bf16 x / w blocks
        + 4 * TN                      # f32 bias block
        + out_itemsize * TB * TN      # output block
    )
    # Double-buffered pipeline blocks + f32 accumulator scratch, 2x margin,
    # capped at 32 MiB (within v7x's default scoped VMEM, fine on v5e/v6e).
    vmem_bytes = int(min(max(2 * (2 * block_bytes + 4 * TB * TN), 4 << 20), 32 << 20))

    cost = pl.CostEstimate(
        flops=2 * B_pad * K_pad * N_pad,
        transcendentals=B_pad * N_pad,
        bytes_accessed=(
            2 * (B_pad * K_pad + K_pad * N_pad)
            + 4 * N_pad
            + out_itemsize * B_pad * N_pad
        ),
    )

    y = pl.pallas_call(
        _linear_sigmoid_kernel,
        out_shape=jax.ShapeDtypeStruct((B_pad, N_pad), out_dtype),
        grid=grid,
        in_specs=[
            pl.BlockSpec((TB, TK), lambda i, j, k: (i, k)),   # x tile (streamed)
            pl.BlockSpec((TK, TN), lambda i, j, k: (k, j)),   # weight tile
            pl.BlockSpec((1, TN), lambda i, j, k: (0, j)),    # bias tile
        ],
        out_specs=pl.BlockSpec((TB, TN), lambda i, j, k: (i, j)),
        scratch_shapes=[pltpu.VMEM((TB, TN), jnp.float32)],
        compiler_params=pltpu.CompilerParams(
            dimension_semantics=("parallel", "parallel", "arbitrary"),
            vmem_limit_bytes=vmem_bytes,
        ),
        cost_estimate=cost,
    )(x_in, w_in, b_in)

    if (B_pad, N_pad) != (B, N):
        y = y[:B, :N]
    return y


if __name__ == "__main__":
    # Small shapes consistent with Net(n_inp, n_out)
    batch, n_inp, n_out = 8, 32, 16

    key = jax.random.PRNGKey(0)
    kx, kw, kb = jax.random.split(key, 3)

    # Deterministic params mimicking PyTorch nn.Linear default init:
    # U(-1/sqrt(n_inp), 1/sqrt(n_inp)) for both weight and bias.
    bound = 1.0 / jnp.sqrt(jnp.float32(n_inp))
    # PyTorch weight is (n_out, n_inp); store transposed (n_inp, n_out).
    w_pt = jax.random.uniform(kw, (n_out, n_inp), jnp.float32, -bound, bound)
    b = jax.random.uniform(kb, (n_out,), jnp.float32, -bound, bound)
    w = w_pt.T

    x = jax.random.normal(kx, (batch, n_inp), jnp.float32)

    y = net_forward(x, w, b)
    y = jax.block_until_ready(y)

    # Sanity check against plain f32 JAX reference.  bf16 MXU inputs + approx
    # reciprocal need a looser tolerance than pure-f32.
    y_ref = jax.nn.sigmoid(x @ w + b)
    assert y.shape == (batch, n_out)
    assert jnp.allclose(y, y_ref, atol=2e-2, rtol=2e-2), float(
        jnp.max(jnp.abs(y - y_ref))
    )

    print("KERNEL_OK")
</pallas_src>

<mosaic_0001>
module attributes {stable_mosaic.version = 11 : i64} {
  func.func @_linear_sigmoid_kernel(%arg0: i32, %arg1: i32, %arg2: i32, %arg3: memref<8x32xbf16, #tpu.memory_space<vmem>>, %arg4: memref<32x16xbf16, #tpu.memory_space<vmem>>, %arg5: memref<1x16xf32, #tpu.memory_space<vmem>>, %arg6: memref<8x16xf32, #tpu.memory_space<vmem>>, %arg7: memref<8x16xf32, #tpu.memory_space<vmem>>) attributes {dimension_semantics = [#tpu.dimension_semantics<parallel>, #tpu.dimension_semantics<parallel>, #tpu.dimension_semantics<arbitrary>], iteration_bounds = array<i64: 1, 1, 1>, scalar_prefetch = 0 : i64, scratch_operands = 1 : i64, tpu.core_type = #tpu.core_type<tc>, window_params = [{transform_indices = @transform_0, window_bounds = array<i64: 8, 32>}, {transform_indices = @transform_1, window_bounds = array<i64: 32, 16>}, {transform_indices = @transform_2, window_bounds = array<i64: 1, 16>}, {transform_indices = @transform_3, window_bounds = array<i64: 8, 16>}]} {
    %c0_i32 = arith.constant 0 : i32
    %0 = arith.cmpi eq, %arg2, %c0_i32 : i32
    %1 = arith.extui %0 : i1 to i32
    %c0_i32_0 = arith.constant 0 : i32
    %2 = arith.cmpi ne, %1, %c0_i32_0 : i32
    scf.if %2 {
      %cst_10 = arith.constant 0.000000e+00 : f32
      %12 = vector.broadcast %cst_10 : f32 to vector<8x16xf32>
      %c0_11 = arith.constant 0 : index
      %c0_12 = arith.constant 0 : index
      %13 = vector.load %arg7[%c0_11, %c0_12] : memref<8x16xf32, #tpu.memory_space<vmem>>, vector<8x16xf32>
      tpu.vector_store %arg7[%c0_11, %c0_12], %12 {strides = array<i32>} : memref<8x16xf32, #tpu.memory_space<vmem>>, vector<8x16xf32>,
    } else {
    }
    %c0 = arith.constant 0 : index
    %c0_1 = arith.constant 0 : index
    %3 = vector.load %arg7[%c0, %c0_1] : memref<8x16xf32, #tpu.memory_space<vmem>>, vector<8x16xf32>
    %c0_2 = arith.constant 0 : index
    %c0_3 = arith.constant 0 : index
    %4 = vector.load %arg3[%c0_2, %c0_3] : memref<8x32xbf16, #tpu.memory_space<vmem>>, vector<8x32xbf16>
    %c0_4 = arith.constant 0 : index
    %c0_5 = arith.constant 0 : index
    %5 = vector.load %arg4[%c0_4, %c0_5] : memref<32x16xbf16, #tpu.memory_space<vmem>>, vector<32x16xbf16>
    %cst = arith.constant dense<0.000000e+00> : vector<8x16xf32>
    %6 = tpu.matmul %4, %5, %cst {dimension_numbers = #tpu.dot_dimension_numbers<[1], [0], [0], [1], [0, 0, 1, 1], [], []>} : vector<8x32xbf16>, vector<32x16xbf16>, vector<8x16xf32> -> vector<8x16xf32>
    %7 = arith.addf %3, %6 : vector<8x16xf32>
    %c0_6 = arith.constant 0 : index
    %c0_7 = arith.constant 0 : index
    %8 = vector.load %arg7[%c0_6, %c0_7] : memref<8x16xf32, #tpu.memory_space<vmem>>, vector<8x16xf32>
    tpu.vector_store %arg7[%c0_6, %c0_7], %7 {strides = array<i32>} : memref<8x16xf32, #tpu.memory_space<vmem>>, vector<8x16xf32>,
    %c0_i32_8 = arith.constant 0 : i32
    %9 = arith.cmpi eq, %arg2, %c0_i32_8 : i32
    %10 = arith.extui %9 : i1 to i32
    %c0_i32_9 = arith.constant 0 : i32
    %11 = arith.cmpi ne, %10, %c0_i32_9 : i32
    scf.if %11 {
      %c0_10 = arith.constant 0 : index
      %c0_11 = arith.constant 0 : index
      %12 = vector.load %arg7[%c0_10, %c0_11] : memref<8x16xf32, #tpu.memory_space<vmem>>, vector<8x16xf32>
      %c0_12 = arith.constant 0 : index
      %c0_13 = arith.constant 0 : index
      %13 = vector.load %arg5[%c0_12, %c0_13] : memref<1x16xf32, #tpu.memory_space<vmem>>, vector<1x16xf32>
      %14 = vector.broadcast %13 : vector<1x16xf32> to vector<8x16xf32>
      %15 = arith.addf %12, %14 : vector<8x16xf32>
      %cst_14 = arith.constant 0.000000e+00 : f32
      %16 = vector.broadcast %cst_14 : f32 to vector<8x16xf32>
      %17 = arith.subf %16, %15 : vector<8x16xf32>
      %18 = math.exp %17 : vector<8x16xf32>
      %cst_15 = arith.constant 1.000000e+00 : f32
      %19 = vector.broadcast %cst_15 : f32 to vector<8x16xf32>
      %20 = arith.addf %19, %18 : vector<8x16xf32>
      %21 = tpu.reciprocal %20 {approx = true} : vector<8x16xf32> -> vector<8x16xf32>
      %c0_16 = arith.constant 0 : index
      %c0_17 = arith.constant 0 : index
      %22 = vector.load %arg6[%c0_16, %c0_17] : memref<8x16xf32, #tpu.memory_space<vmem>>, vector<8x16xf32>
      tpu.vector_store %arg6[%c0_16, %c0_17], %21 {strides = array<i32>} : memref<8x16xf32, #tpu.memory_space<vmem>>, vector<8x16xf32>,
    } else {
    }
    return
  }
  func.func @transform_0(%arg0: i32, %arg1: i32, %arg2: i32) -> (i32, i32) {
    %c0_i32 = arith.constant 0 : i32
    return %arg0, %arg2 : i32, i32
  }
  func.func @transform_1(%arg0: i32, %arg1: i32, %arg2: i32) -> (i32, i32) {
    %c0_i32 = arith.constant 0 : i32
    return %arg2, %arg1 : i32, i32
  }
  func.func @transform_2(%arg0: i32, %arg1: i32, %arg2: i32) -> (i32, i32) {
    %c0_i32 = arith.constant 0 : i32
    %c0_i32_0 = arith.constant 0 : i32
    return %c0_i32, %arg1 : i32, i32
  }
  func.func @transform_3(%arg0: i32, %arg1: i32, %arg2: i32) -> (i32, i32) {
    %c0_i32 = arith.constant 0 : i32
    return %arg0, %arg1 : i32, i32
  }
}

</mosaic_0001>

<llo_original>
// kernel: net_forward.1
$region0: #{net_forward.1}
  #allocation0 [shape = 'u32[]', space=smem, size = 0x4, offset = 0x4, fixed_abs, tag = 'smem constant byte address 0x4 - core index']
  #allocation1 [shape = 'u32[144,128]{1,0:T(1,128)}', space=vmem, size = 0x12000, scoped, tag = 'internal scratch']
  #allocation2 [shape = 'f32[8,16]{1,0:T(8,128)}', space=vmem, size = 0x1000, scoped, tag = 'scratch operand']
  %s0 = inlined_call_operand.vmem [shape: bf16[8,32], index: 0, kind: input, shape index: {}]
  %s1 = inlined_call_operand.vmem [shape: bf16[32,16], index: 1, kind: input, shape index: {}]
  %s2 = inlined_call_operand.vmem [shape: f32[1,16], index: 2, kind: input, shape index: {}]
  %s3 = inlined_call_operand.hbm [shape: f32[8,16], index: 3, kind: output, shape index: {}]
  %s4 = sld [smem:[#allocation0]]
  $region30: #{net_forward.1} parent=0
    _
  %s6 = ssub.s32 1, %s4
  %s7 = scalar_select 0, %s6, %s4
  $region1: #{net_forward.1} parent=0
    #allocation3 [shape = 'u8[4096]{0}', space=vmem, size = 0x1000, scoped, tag = 'output window, operand 0, single buffered']
    #allocation4 [shape = 's32[1]{0}', space=sflag, size = 0x4, scoped, tag = 'scoped memory for net_forward.1']
    %8 = vsyncpa [#allocation4], 0
    // Predicated region
    $region2: #{net_forward.1} parent=1 // pred_check
      _
    $region3: #{net_forward.1} parent=1 // pred_check_branch
      %10 = sbr.rel (0) target = $region5
    $region4: #{net_forward.1} parent=1 // pred_region
      _
    $region5: #{net_forward.1} parent=1 // pred_fallthru
      _
    // Predicated region
    $region6: #{net_forward.1} parent=1 // pred_check
      _
    $region7: #{net_forward.1} parent=1 // pred_check_branch
      %12 = sbr.rel (0) target = $region9
    $region8: #{net_forward.1} parent=1 // pred_region
      _
    $region9: #{net_forward.1} parent=1 // pred_fallthru
      _
    // Predicated region
    $region10: #{net_forward.1} parent=1 // pred_check
      _
    $region11: #{net_forward.1} parent=1 // pred_check_branch
      %14 = sbr.rel (0) target = $region13
    $region12: #{net_forward.1} parent=1 // pred_region
      _
    $region13: #{net_forward.1} parent=1 // pred_fallthru
      _
    %p16 = scmp.eq.s32.totalorder 0, 0
    // Predicated region
    $region14: #{net_forward.1} parent=1 // pred_check
      %p17 = pneg %p16
    $region15: #{net_forward.1} parent=1 // pred_check_branch
      %19 = sbr.rel (%p17) target = $region17
    $region16: #{net_forward.1} parent=1 // pred_region
      %vm20 = vcmask 130048
      %21 = vst.msk [vmem:[#allocation2] sm:$0xff] %vm20, 0.0
    $region17: #{net_forward.1} parent=1 // pred_fallthru
      _
    %v22 = vld [vmem:[#allocation2] sm:$0xff]
    %v23 = vld [vmem:[%s0] sm:$0xf]
    %v24 = vld [vmem:[%s1] sm:$0xf]
    %v25 = vld [vmem:[%s1 + $0x4] sm:$0xf]
    %v26 = vld [vmem:[%s1 + $0x8] sm:$0xf]
    %v27 = vld [vmem:[%s1 + $0xc] sm:$0xf]
    %v32 = vunpack.c.l.b16 %v24
    %v33 = vunpack.c.l.b16 %v25
    %v34 = vunpack.c.l.b16 %v26
    %v35 = vunpack.c.l.b16 %v27
    %v36 = vpack.c.b16 %v33, %v32
    %v37 = vpack.c.b16 %v35, %v34
    %vm40 = vcmask 261120
    %v42 = vsel %vm40, %v23, 0
    %44 = vmatprep.subr.bf16.mxu0 0
    %45 = vmatpush1.bf16.msra.mxu0 0
    %46 = vmatprep.subr.bf16.mxu0 0
    %47 = vmatpush1.bf16.msra.mxu0 0
    %48 = vmatprep.subr.bf16.mxu0 0
    %49 = vmatpush1.bf16.msra.mxu0 0
    %50 = vmatprep.subr.bf16.mxu0 0
    %51 = vmatpush1.bf16.msra.mxu0 0
    %52 = vmatprep.subr.bf16.mxu0 0
    %53 = vmatpush1.bf16.msra.mxu0 0
    %54 = vmatprep.subr.bf16.mxu0 0
    %55 = vmatpush1.bf16.msra.mxu0 0
    %56 = vmatprep.subr.bf16.mxu0 0
    %57 = vmatpush1.bf16.msra.mxu0 %v37
    %58 = vmatprep.subr.bf16.mxu0 0
    %59 = vmatpush1.bf16.msra.mxu0 %v36
    %60 = vmatprep.subr.bf16.mxu0 0
    %61 = vmatpush2.bf16.msra.mxu0 0
    %62 = vmatprep.subr.bf16.mxu0 0
    %63 = vmatpush2.bf16.msra.mxu0 0
    %64 = vmatprep.subr.bf16.mxu0 0
    %65 = vmatpush2.bf16.msra.mxu0 0
    %66 = vmatprep.subr.bf16.mxu0 0
    %67 = vmatpush2.bf16.msra.mxu0 0
    %68 = vmatprep.subr.bf16.mxu0 0
    %69 = vmatpush2.bf16.msra.mxu0 0
    %70 = vmatprep.subr.bf16.mxu0 0
    %71 = vmatpush2.bf16.msra.mxu0 0
    %72 = vmatprep.subr.bf16.mxu0 0
    %73 = vmatpush2.bf16.msra.mxu0 0
    %74 = vmatprep.subr.bf16.mxu0 0
    %75 = vmatpush2.bf16.msra.mxu0 0
    %76 = vmatprep.mubr.bf16.mxu0 0
    %77 = vmatmul.mubr.bf16.gmra.mxu0 %v42
    %v78 = vpop.f32.mrf.mxu0
    %v79 = vadd.f32 0.0, %v78
    %v80 = vpop.f32.mrf.mxu0
    %v81 = vpop.f32.mrf.mxu0
    %v82 = vpop.f32.mrf.mxu0
    %83 = vdwg.mxu0
    %v84 = vadd.f32 %v22, %v79
    %vm85 = vcmask 130048
    %86 = vst.msk [vmem:[#allocation2] sm:$0xff] %vm85, %v84
    // Predicated region
    $region18: #{net_forward.1} parent=1 // pred_check
      %p87 = pneg %p16
    $region19: #{net_forward.1} parent=1 // pred_check_branch
      %89 = sbr.rel (%p87) target = $region21
    $region20: #{net_forward.1} parent=1 // pred_region
      %v90 = vld [vmem:[#allocation2] sm:$0xff]
      %v91 = vld [vmem:[%s2] sm:$0x1]
      %v93 = vlaneseq
      %v94 = vshrl.u32 %v93, 7
      %v95 = vsub.s32 0, %v94
      %v96 = vrot.slane %v91, %v95
      %v98 = vadd.f32 %v90, %v96
      %v99 = vsub.f32 0.0, %v98
      %v100 = vmul.f32 %v99, 1.442695
      %v101 = vpow.pop %v100
      %v102 = vadd.f32 %v101, 1.0
      %v103 = vrcp.pop %v102
      %104 = vst.msk [vmem:[#allocation3] sm:$0xff] %vm85, %v103
    $region21: #{net_forward.1} parent=1 // pred_fallthru
      _
    // Predicated region
    $region22: #{net_forward.1} parent=1 // pred_check
      _
    $region23: #{net_forward.1} parent=1 // pred_check_branch
      %106 = sbr.rel (0) target = $region25
    $region24: #{net_forward.1} parent=1 // pred_region
      %s108 = ssub.s32 128, 128
      %109 = vsyncadd [#allocation4], %s108
      %s111 = sshll.u32 [#allocation3], 4
      %s112 = int_to_ptr.vmem [resolvable:$true] %s111
      %114 = dma.vmem_to_hbm [thread:$0]  %s112, 128, %s3, [#allocation4]
    $region25: #{net_forward.1} parent=1 // pred_fallthru
      _
    // Predicated region
    $region26: #{net_forward.1} parent=1 // pred_check
      _
    $region27: #{net_forward.1} parent=1 // pred_check_branch
      %116 = sbr.rel (0) target = $region29
    $region28: #{net_forward.1} parent=1 // pred_region
      %117 = dma.done [#allocation4], 128
    $region29: #{net_forward.1} parent=1 // pred_fallthru
      _
    %118 = vsyncpa [#allocation4], 1

</llo_original>
